<compile_context>
chip_gen: v7x
topology: tpu7x:2x2x1
jax: 0.10.0
libtpu: 0.0.40
codegen_flags: <defaults>
</compile_context>

<pallas_src>
import math

import jax
import jax.numpy as jnp
from jax.experimental import pallas as pl
from jax.experimental.pallas import tpu as pltpu


def _chip_facts():
    """(multi_tensorcore, per-core VMEM capacity bytes)."""
    kind = ""
    try:
        kind = jax.devices()[0].device_kind.lower()
    except Exception:
        pass
    multi_tc = "v7" in kind  # v7x: 2 TensorCores / chip, 64 MiB VMEM per TC
    vmem_cap = None
    try:
        vmem_cap = int(pltpu.get_tpu_info().vmem_capacity_bytes)
    except Exception:
        vmem_cap = None
    if not vmem_cap or vmem_cap <= 0:
        vmem_cap = (64 << 20) if multi_tc else (128 << 20)
    # Clamp to the per-TensorCore physical figure (query may be chip-level).
    vmem_cap = min(vmem_cap, (64 << 20) if multi_tc else (128 << 20))
    return multi_tc, vmem_cap


def _select_tile_m(B: int) -> int:
    for tm in (512, 256, 128, 64, 32, 16, 8):
        if B % tm == 0:
            return tm
    return B  # block dim == full array dim is always legal


def _vmem_need_bytes(tile_m, tile_n, d_list, r_bytes, x_bytes, B, x_resident):
    """Conservative VMEM footprint for one pipelined step."""
    r_stream = 2 * sum(d * tile_n * r_bytes for d in d_list)      # 2x-buffered R slabs
    if x_resident:
        x_buf = 2 * sum(B * d * x_bytes for d in d_list)          # resident activations
    else:
        x_buf = 2 * sum(tile_m * d * x_bytes for d in d_list)     # streamed row slabs
    out_buf = 2 * tile_m * tile_n * 4                              # 2x-buffered output
    interm = 2 * tile_m * tile_n * 4                               # live f32 matmul results
    scratch = 1 << 20                                              # compiler scratch
    return r_stream + x_buf + out_buf + interm + scratch


def _select_tile_n(B, D, tile_m, d_list, r_bytes, x_bytes, vmem_budget,
                   multi_tc, x_resident) -> int:
    cands = [t for t in (4096, 2048, 1024, 512, 256, 128) if t <= D and D % t == 0]
    if not cands:
        cands = [D]  # ragged / small D: single full-width column tile
    fitting = [t for t in cands
               if _vmem_need_bytes(tile_m, t, d_list, r_bytes, x_bytes, B,
                                   x_resident) <= vmem_budget]
    if not fitting:
        return min(cands)
    best = max(fitting)
    if multi_tc:
        # v7x: split along the COLUMN axis so each TensorCore streams a disjoint
        # half of R (chip-level R traffic stays 1x).  Only worth it when the
        # per-step R slab is substantial; tiny problems stay single-step.
        def r_per_step(t):
            return sum(d * t * r_bytes for d in d_list)
        halves = [t for t in fitting if D // t >= 2 and r_per_step(t) > (256 << 10)]
        if halves:
            best = max(halves)
    return best


def _make_random_layer_kernel(num_inputs: int, scale: float, tile_m: int,
                              x_resident: bool):
    """One (tile_m, tile_n) output tile.

    refs = (x_0, ..., x_{n-1}, R_0, ..., R_{n-1}, o)
      x_i: (B, d_i) resident  OR  (tile_m, d_i) streamed   (r_dtype)
      R_i: (d_i, tile_n)                                   (r_dtype)
      o  : (tile_m, tile_n) f32
    Matmuls hit the MXU with f32 accumulation; scaling and the elementwise
    product stay f32 on the VPU, accumulated directly into o_ref.
    """

    def kernel(*refs):
        x_refs = refs[:num_inputs]
        r_refs = refs[num_inputs:2 * num_inputs]
        o_ref = refs[2 * num_inputs]

        if x_resident:
            bi = pl.program_id(1)  # inner (batch) grid axis
            row0 = pl.multiple_of(bi * tile_m, tile_m)

        def proj(i):
            r = r_refs[i][...]
            if x_resident:
                x = x_refs[i][pl.ds(row0, tile_m), :]
            else:
                x = x_refs[i][...]
            return jnp.dot(x, r, preferred_element_type=jnp.float32)

        o_ref[...] = proj(0) * scale
        for i in range(1, num_inputs):
            o_ref[...] = o_ref[...] * proj(i)

    return kernel


def random_layer_forward(input_list, random_matrices, *,
                         r_dtype=jnp.bfloat16, tile_m=None, tile_n=None):
    """Pallas implementation of RandomLayer.forward.

    input_list:      list of (B, d_i) float32 arrays
    random_matrices: list of (d_i, D) float32 arrays
    r_dtype:         streaming dtype for BOTH x_i and R_i (bf16 fast path by
                     default; pass jnp.float32 for the exact path).
    returns:         (B, D) float32
    """
    n = len(input_list)
    assert n == len(random_matrices) and n >= 1
    B = input_list[0].shape[0]
    D = random_matrices[0].shape[1]
    d_list = []
    for x, r in zip(input_list, random_matrices):
        assert x.shape[0] == B and x.shape[1] == r.shape[0] and r.shape[1] == D
        d_list.append(x.shape[1])

    r_bytes = jnp.dtype(r_dtype).itemsize
    x_bytes = r_bytes
    multi_tc, vmem_cap = _chip_facts()
    vmem_budget = int(0.6 * vmem_cap)  # headroom for regalloc / misc scratch

    # Keep activations fully VMEM-resident when they are small (they usually
    # are: B * sum(d_i) elements); stream per batch tile otherwise.
    x_resident = 2 * sum(B * d * x_bytes for d in d_list) <= vmem_budget // 4

    if tile_m is None:
        tile_m = _select_tile_m(B)
    if tile_n is None:
        tile_n = _select_tile_n(B, D, tile_m, d_list, r_bytes, x_bytes,
                                vmem_budget, multi_tc, x_resident)
    assert (B % tile_m == 0) or tile_m == B, "batch tile must evenly cover B"
    assert (D % tile_n == 0) or tile_n == D, "column tile must evenly cover D"

    scale = 1.0 / math.pow(float(D), 1.0 / n)
    kernel = _make_random_layer_kernel(n, scale, tile_m, x_resident)

    # Cast once in the wrapper: R streaming dominates HBM traffic, and casting
    # x here removes the per-step in-kernel cast.  (No-op when r_dtype=f32.)
    mats = [r.astype(r_dtype) for r in random_matrices]
    xs = [x.astype(r_dtype) for x in input_list]

    n_col = max(D // tile_n, 1)
    n_row = max(B // tile_m, 1)
    grid = (n_col, n_row)  # column-outer, batch-inner

    if x_resident:
        x_specs = [pl.BlockSpec((B, d), lambda j, i: (0, 0)) for d in d_list]
    else:
        x_specs = [pl.BlockSpec((tile_m, d), lambda j, i: (i, 0)) for d in d_list]
    r_specs = [pl.BlockSpec((d, tile_n), lambda j, i: (0, j)) for d in d_list]
    out_spec = pl.BlockSpec((tile_m, tile_n), lambda j, i: (i, j))

    # Honest bandwidth-dominated estimate for the chosen streaming pattern.
    flops = 2 * B * D * sum(d_list) + B * D * n
    r_read = sum(d * D * r_bytes for d in d_list)                 # once total
    x_read = sum(B * d * x_bytes for d in d_list)
    if not x_resident:
        x_read *= n_col                                           # re-streamed per column sweep
    bytes_accessed = r_read + x_read + B * D * 4

    fn = pl.pallas_call(
        kernel,
        out_shape=jax.ShapeDtypeStruct((B, D), jnp.float32),
        grid_spec=pltpu.PrefetchScalarGridSpec(
            num_scalar_prefetch=0,
            grid=grid,
            in_specs=x_specs + r_specs,
            out_specs=out_spec,
        ),
        compiler_params=pltpu.CompilerParams(
            # Only the column axis is parallel: on v7x this shards disjoint
            # halves of R across the two TensorCores; the inner batch sweep
            # stays sequential so R is not re-DMAed.
            dimension_semantics=("parallel", "arbitrary"),
            vmem_limit_bytes=int(0.8 * vmem_cap),
        ),
        cost_estimate=pl.CostEstimate(
            flops=flops, transcendentals=0, bytes_accessed=bytes_accessed),
    )
    return fn(*xs, *mats)


def random_layer_reference(input_list, random_matrices):
    """Plain-JAX reference mirroring the PyTorch forward exactly (f32)."""
    n = len(input_list)
    D = random_matrices[0].shape[1]
    outs = [x @ r for x, r in zip(input_list, random_matrices)]
    y = outs[0] / math.pow(float(D), 1.0 / n)
    for o in outs[1:]:
        y = y * o
    return y


if __name__ == "__main__":
    # Deterministic synthetic parameters / inputs (no checkpoint load).
    # RandomLayer(input_dim_list=[32, 16], output_dim=256) on a batch of 8.
    key = jax.random.PRNGKey(0)
    k_x0, k_x1, k_r0, k_r1 = jax.random.split(key, 4)

    B = 8
    input_dim_list = [32, 16]
    output_dim = 256

    x0 = jax.random.normal(k_x0, (B, input_dim_list[0]), dtype=jnp.float32)
    x1 = jax.random.normal(k_x1, (B, input_dim_list[1]), dtype=jnp.float32)
    # self.random_matrix[i] = torch.randn(input_dim_list[i], output_dim)
    R0 = jax.random.normal(k_r0, (input_dim_list[0], output_dim), dtype=jnp.float32)
    R1 = jax.random.normal(k_r1, (input_dim_list[1], output_dim), dtype=jnp.float32)

    inputs = [x0, x1]
    mats = [R0, R1]

    ref = random_layer_reference(inputs, mats)

    # Exact path (x and R streamed in f32): must match the module closely.
    out_exact = jax.block_until_ready(
        random_layer_forward(inputs, mats, r_dtype=jnp.float32))
    assert out_exact.shape == (B, output_dim)
    assert jnp.allclose(out_exact, ref, rtol=1e-5, atol=1e-5), "f32 path mismatch"

    # Default fast path (x and R streamed in bf16, f32 MXU accumulation):
    # product of two bf16-rounded projections -> loosened norm-relative check.
    out = jax.block_until_ready(random_layer_forward(inputs, mats))
    assert out.shape == (B, output_dim)
    rel_err = float(jnp.linalg.norm(out - ref) / jnp.linalg.norm(ref))
    assert rel_err < 3e-2, f"bf16 path relative error too large: {rel_err}"

    print("KERNEL_OK")
</pallas_src>

<mosaic_0001>
module attributes {stable_mosaic.version = 11 : i64} {
  func.func @kernel(%arg0: i32, %arg1: i32, %arg2: memref<8x32xf32, #tpu.memory_space<vmem>>, %arg3: memref<8x16xf32, #tpu.memory_space<vmem>>, %arg4: memref<32x256xf32, #tpu.memory_space<vmem>>, %arg5: memref<16x256xf32, #tpu.memory_space<vmem>>, %arg6: memref<8x256xf32, #tpu.memory_space<vmem>>) attributes {dimension_semantics = [#tpu.dimension_semantics<parallel>, #tpu.dimension_semantics<arbitrary>], iteration_bounds = array<i64: 1, 1>, scalar_prefetch = 0 : i64, scratch_operands = 0 : i64, tpu.core_type = #tpu.core_type<tc>, window_params = [{pipeline_mode = #tpu.pipeline_mode<synchronous>, transform_indices = @transform_0, window_bounds = array<i64: 8, 32>}, {pipeline_mode = #tpu.pipeline_mode<synchronous>, transform_indices = @transform_1, window_bounds = array<i64: 8, 16>}, {transform_indices = @transform_2, window_bounds = array<i64: 32, 256>}, {transform_indices = @transform_3, window_bounds = array<i64: 16, 256>}, {transform_indices = @transform_4, window_bounds = array<i64: 8, 256>}]} {
    %c8_i32 = arith.constant 8 : i32
    %0 = arith.muli %arg1, %c8_i32 : i32
    %1 = tpu.assume_multiple %0, 8 : i32
    %c0 = arith.constant 0 : index
    %c0_0 = arith.constant 0 : index
    %2 = vector.load %arg4[%c0, %c0_0] : memref<32x256xf32, #tpu.memory_space<vmem>>, vector<32x256xf32>
    %3 = arith.index_cast %1 : i32 to index
    %c0_1 = arith.constant 0 : index
    %4 = vector.load %arg2[%3, %c0_1] : memref<8x32xf32, #tpu.memory_space<vmem>>, vector<8x32xf32>
    %cst = arith.constant dense<0.000000e+00> : vector<8x256xf32>
    %5 = tpu.matmul %4, %2, %cst {dimension_numbers = #tpu.dot_dimension_numbers<[1], [0], [0], [1], [0, 0, 1, 1], [], []>} : vector<8x32xf32>, vector<32x256xf32>, vector<8x256xf32> -> vector<8x256xf32>
    %cst_2 = arith.constant 6.250000e-02 : f32
    %6 = vector.broadcast %cst_2 : f32 to vector<8x256xf32>
    %7 = arith.mulf %5, %6 : vector<8x256xf32>
    %c0_3 = arith.constant 0 : index
    %c0_4 = arith.constant 0 : index
    %8 = vector.load %arg6[%c0_3, %c0_4] : memref<8x256xf32, #tpu.memory_space<vmem>>, vector<8x256xf32>
    tpu.vector_store %arg6[%c0_3, %c0_4], %7 {strides = array<i32>} : memref<8x256xf32, #tpu.memory_space<vmem>>, vector<8x256xf32>,
    %c0_5 = arith.constant 0 : index
    %c0_6 = arith.constant 0 : index
    %9 = vector.load %arg6[%c0_5, %c0_6] : memref<8x256xf32, #tpu.memory_space<vmem>>, vector<8x256xf32>
    %c0_7 = arith.constant 0 : index
    %c0_8 = arith.constant 0 : index
    %10 = vector.load %arg5[%c0_7, %c0_8] : memref<16x256xf32, #tpu.memory_space<vmem>>, vector<16x256xf32>
    %11 = arith.index_cast %1 : i32 to index
    %c0_9 = arith.constant 0 : index
    %12 = vector.load %arg3[%11, %c0_9] : memref<8x16xf32, #tpu.memory_space<vmem>>, vector<8x16xf32>
    %cst_10 = arith.constant dense<0.000000e+00> : vector<8x256xf32>
    %13 = tpu.matmul %12, %10, %cst_10 {dimension_numbers = #tpu.dot_dimension_numbers<[1], [0], [0], [1], [0, 0, 1, 1], [], []>} : vector<8x16xf32>, vector<16x256xf32>, vector<8x256xf32> -> vector<8x256xf32>
    %14 = arith.mulf %9, %13 : vector<8x256xf32>
    %c0_11 = arith.constant 0 : index
    %c0_12 = arith.constant 0 : index
    %15 = vector.load %arg6[%c0_11, %c0_12] : memref<8x256xf32, #tpu.memory_space<vmem>>, vector<8x256xf32>
    tpu.vector_store %arg6[%c0_11, %c0_12], %14 {strides = array<i32>} : memref<8x256xf32, #tpu.memory_space<vmem>>, vector<8x256xf32>,
    return
  }
  func.func @transform_0(%arg0: i32, %arg1: i32) -> (i32, i32) {
    %c0_i32 = arith.constant 0 : i32
    %c0_i32_0 = arith.constant 0 : i32
    %c0_i32_1 = arith.constant 0 : i32
    return %c0_i32, %c0_i32_0 : i32, i32
  }
  func.func @transform_1(%arg0: i32, %arg1: i32) -> (i32, i32) {
    %c0_i32 = arith.constant 0 : i32
    %c0_i32_0 = arith.constant 0 : i32
    %c0_i32_1 = arith.constant 0 : i32
    return %c0_i32, %c0_i32_0 : i32, i32
  }
  func.func @transform_2(%arg0: i32, %arg1: i32) -> (i32, i32) {
    %c0_i32 = arith.constant 0 : i32
    %c0_i32_0 = arith.constant 0 : i32
    return %c0_i32, %arg0 : i32, i32
  }
  func.func @transform_3(%arg0: i32, %arg1: i32) -> (i32, i32) {
    %c0_i32 = arith.constant 0 : i32
    %c0_i32_0 = arith.constant 0 : i32
    return %c0_i32, %arg0 : i32, i32
  }
  func.func @transform_4(%arg0: i32, %arg1: i32) -> (i32, i32) {
    %c0_i32 = arith.constant 0 : i32
    return %arg1, %arg0 : i32, i32
  }
}

</mosaic_0001>

<llo_original>
// kernel: tpu_custom_call.1
$region0: #{tpu_custom_call.1}
  #allocation0 [shape = 'u32[]', space=smem, size = 0x4, offset = 0x4, fixed_abs, tag = 'smem constant byte address 0x4 - core index']
  #allocation1 [shape = 'u32[144,128]{1,0:T(1,128)}', space=vmem, size = 0x12000, scoped, tag = 'internal scratch']
  %s0 = inlined_call_operand.hbm [shape: f32[8,32], index: 0, kind: input, shape index: {}]
  %s1 = inlined_call_operand.hbm [shape: f32[8,16], index: 1, kind: input, shape index: {}]
  %s2 = inlined_call_operand.hbm [shape: f32[32,256], index: 2, kind: input, shape index: {}]
  %s3 = inlined_call_operand.hbm [shape: f32[16,256], index: 3, kind: input, shape index: {}]
  %s4 = inlined_call_operand.hbm [shape: f32[8,256], index: 4, kind: output, shape index: {}]
  %s5 = sld [smem:[#allocation0]]
  $region42: #{tpu_custom_call.1} parent=0
    _
  %s7 = ssub.s32 1, %s5
  %s8 = scalar_select 0, %s7, %s5
  $region1: #{tpu_custom_call.1} parent=0
    #allocation2 [shape = 'u8[4096]{0}', space=vmem, size = 0x1000, scoped, tag = 'input window, operand 0, single buffered']
    #allocation3 [shape = 's32[1]{0}', space=sflag, size = 0x4, scoped, tag = 'scoped memory for tpu_custom_call.1']
    #allocation4 [shape = 's32[1]{0}', space=sflag, size = 0x4, scoped, tag = 'scoped memory for tpu_custom_call.1']
    #allocation5 [shape = 'u8[4096]{0}', space=vmem, size = 0x1000, scoped, tag = 'input window, operand 1, single buffered']
    #allocation6 [shape = 's32[1]{0}', space=sflag, size = 0x4, scoped, tag = 'scoped memory for tpu_custom_call.1']
    #allocation7 [shape = 'u8[32768]{0}', space=vmem, size = 0x8000, scoped, tag = 'input window, operand 2, single buffered']
    #allocation8 [shape = 'u8[16384]{0}', space=vmem, size = 0x4000, scoped, tag = 'input window, operand 3, single buffered']
    #allocation9 [shape = 's32[1]{0}', space=sflag, size = 0x4, scoped, tag = 'scoped memory for tpu_custom_call.1']
    #allocation10 [shape = 'u8[8192]{0}', space=vmem, size = 0x2000, scoped, tag = 'output window, operand 0, single buffered']
    %9 = vsyncpa [#allocation3], 0
    %10 = vsyncpa [#allocation6], 0
    %11 = vsyncpa [#allocation9], 0
    %12 = vsyncpa [#allocation4], 0
    // Predicated region
    $region2: #{tpu_custom_call.1} parent=1 // pred_check
      _
    $region3: #{tpu_custom_call.1} parent=1 // pred_check_branch
      %14 = sbr.rel (0) target = $region5
    $region4: #{tpu_custom_call.1} parent=1 // pred_region
      %s16 = ssub.s32 128, 128
      %17 = vsyncadd [#allocation3], %s16
      %s19 = sshll.u32 [#allocation2], 4
      %s20 = int_to_ptr.vmem [resolvable:$true] %s19
      %22 = dma.hbm_to_vmem [thread:$0]  %s0, 128, %s20, [#allocation3]
    $region5: #{tpu_custom_call.1} parent=1 // pred_fallthru
      _
    // Predicated region
    $region6: #{tpu_custom_call.1} parent=1 // pred_check
      _
    $region7: #{tpu_custom_call.1} parent=1 // pred_check_branch
      %24 = sbr.rel (0) target = $region9
    $region8: #{tpu_custom_call.1} parent=1 // pred_region
      %s26 = ssub.s32 128, 128
      %27 = vsyncadd [#allocation6], %s26
      %s29 = sshll.u32 [#allocation5], 4
      %s30 = int_to_ptr.vmem [resolvable:$true] %s29
      %32 = dma.hbm_to_vmem [thread:$0]  %s1, 128, %s30, [#allocation6]
    $region9: #{tpu_custom_call.1} parent=1 // pred_fallthru
      _
    // Predicated region
    $region10: #{tpu_custom_call.1} parent=1 // pred_check
      _
    $region11: #{tpu_custom_call.1} parent=1 // pred_check_branch
      %34 = sbr.rel (0) target = $region13
    $region12: #{tpu_custom_call.1} parent=1 // pred_region
      %s36 = ssub.s32 1024, 1024
      %37 = vsyncadd [#allocation6], %s36
      %s38 = sshll.u32 [#allocation7], 4
      %s39 = int_to_ptr.vmem [resolvable:$true] %s38
      %44 = dma.hbm_to_vmem [thread:$0]  %s2, 1024, %s39, [#allocation6], 256, 256, 16
    $region13: #{tpu_custom_call.1} parent=1 // pred_fallthru
      _
    // Predicated region
    $region14: #{tpu_custom_call.1} parent=1 // pred_check
      _
    $region15: #{tpu_custom_call.1} parent=1 // pred_check_branch
      %46 = sbr.rel (0) target = $region17
    $region16: #{tpu_custom_call.1} parent=1 // pred_region
      %s48 = ssub.s32 512, 512
      %49 = vsyncadd [#allocation9], %s48
      %s50 = sshll.u32 [#allocation8], 4
      %s51 = int_to_ptr.vmem [resolvable:$true] %s50
      %56 = dma.hbm_to_vmem [thread:$0]  %s3, 512, %s51, [#allocation9], 256, 256, 16
    $region17: #{tpu_custom_call.1} parent=1 // pred_fallthru
      _
    // Predicated region
    $region18: #{tpu_custom_call.1} parent=1 // pred_check
      _
    $region19: #{tpu_custom_call.1} parent=1 // pred_check_branch
      %58 = sbr.rel (0) target = $region21
    $region20: #{tpu_custom_call.1} parent=1 // pred_region
      %59 = dma.done [#allocation3], 128
    $region21: #{tpu_custom_call.1} parent=1 // pred_fallthru
      _
    // Predicated region
    $region22: #{tpu_custom_call.1} parent=1 // pred_check
      _
    $region23: #{tpu_custom_call.1} parent=1 // pred_check_branch
      %61 = sbr.rel (0) target = $region25
    $region24: #{tpu_custom_call.1} parent=1 // pred_region
      %62 = dma.done [#allocation6], 128
    $region25: #{tpu_custom_call.1} parent=1 // pred_fallthru
      _
    // Predicated region
    $region26: #{tpu_custom_call.1} parent=1 // pred_check
      _
    $region27: #{tpu_custom_call.1} parent=1 // pred_check_branch
      %64 = sbr.rel (0) target = $region29
    $region28: #{tpu_custom_call.1} parent=1 // pred_region
      %65 = dma.done [#allocation6], 1024
    $region29: #{tpu_custom_call.1} parent=1 // pred_fallthru
      _
    // Predicated region
    $region30: #{tpu_custom_call.1} parent=1 // pred_check
      _
    $region31: #{tpu_custom_call.1} parent=1 // pred_check_branch
      %67 = sbr.rel (0) target = $region33
    $region32: #{tpu_custom_call.1} parent=1 // pred_region
      %68 = dma.done [#allocation9], 512
    $region33: #{tpu_custom_call.1} parent=1 // pred_fallthru
      _
    %s69 = smul.u32 0, 8
    %v70 = vld [vmem:[#allocation7] sm:$0xff]
    %v71 = vld [vmem:[#allocation7 + $0x8] sm:$0xff]
    %v72 = vld [vmem:[#allocation7 + $0x10] sm:$0xff]
    %v73 = vld [vmem:[#allocation7 + $0x18] sm:$0xff]
    %v74 = vld [vmem:[#allocation7 + $0x20] sm:$0xff]
    %v75 = vld [vmem:[#allocation7 + $0x28] sm:$0xff]
    %v76 = vld [vmem:[#allocation7 + $0x30] sm:$0xff]
    %v77 = vld [vmem:[#allocation7 + $0x38] sm:$0xff]
    %s78 = scalar_lea.vmem [#allocation2], %s69
    %v79 = vld [vmem:[%s78] sm:$0xff]
    %vm80 = vcmask 261120
    %v82 = vsel %vm80, %v79, 0
    %84 = vmatprep.subr.mxu0 %v71
    %85 = vmatpush1.msra.mxu0 %v70
    %86 = vmatprep.subr.mxu0 %v73
    %87 = vmatpush1.msra.mxu0 %v72
    %88 = vmatprep.subr.mxu0 %v75
    %89 = vmatpush1.msra.mxu0 %v74
    %90 = vmatprep.subr.mxu0 %v77
    %91 = vmatpush1.msra.mxu0 %v76
    %92 = vmatprep.subr.mxu0 0.0
    %93 = vmatpush1.msra.mxu0 0.0
    %94 = vmatprep.subr.mxu0 0.0
    %95 = vmatpush1.msra.mxu0 0.0
    %96 = vmatprep.subr.mxu0 0.0
    %97 = vmatpush1.msra.mxu0 0.0
    %98 = vmatprep.subr.mxu0 0.0
    %99 = vmatpush1.msra.mxu0 0.0
    %100 = vmatprep.subr.mxu0 0.0
    %101 = vmatpush1.msra.mxu0 0.0
    %102 = vmatprep.subr.mxu0 0.0
    %103 = vmatpush1.msra.mxu0 0.0
    %104 = vmatprep.subr.mxu0 0.0
    %105 = vmatpush1.msra.mxu0 0.0
    %106 = vmatprep.subr.mxu0 0.0
    %107 = vmatpush1.msra.mxu0 0.0
    %108 = vmatprep.subr.mxu0 0.0
    %109 = vmatpush1.msra.mxu0 0.0
    %110 = vmatprep.subr.mxu0 0.0
    %111 = vmatpush1.msra.mxu0 0.0
    %112 = vmatprep.subr.mxu0 0.0
    %113 = vmatpush1.msra.mxu0 0.0
    %114 = vmatprep.subr.mxu0 0.0
    %115 = vmatpush1.msra.mxu0 0.0
    %116 = vmatprep.subr.mxu0 0.0
    %117 = vmatpush1.msra.mxu0 0.0
    %118 = vmatprep.subr.mxu0 0.0
    %119 = vmatpush1.msra.mxu0 0.0
    %120 = vmatprep.subr.mxu0 0.0
    %121 = vmatpush1.msra.mxu0 0.0
    %122 = vmatprep.subr.mxu0 0.0
    %123 = vmatpush1.msra.mxu0 0.0
    %124 = vmatprep.subr.mxu0 0.0
    %125 = vmatpush1.msra.mxu0 0.0
    %126 = vmatprep.subr.mxu0 0.0
    %127 = vmatpush1.msra.mxu0 0.0
    %128 = vmatprep.subr.mxu0 0.0
    %129 = vmatpush1.msra.mxu0 0.0
    %130 = vmatprep.subr.mxu0 0.0
    %131 = vmatpush1.msra.mxu0 0.0
    %132 = vmatprep.subr.mxu0 0.0
    %133 = vmatpush1.msra.mxu0 0.0
    %134 = vmatprep.subr.mxu0 0.0
    %135 = vmatpush1.msra.mxu0 0.0
    %136 = vmatprep.subr.mxu0 0.0
    %137 = vmatpush1.msra.mxu0 0.0
    %138 = vmatprep.subr.mxu0 0.0
    %139 = vmatpush1.msra.mxu0 0.0
    %140 = vmatprep.subr.mxu0 0.0
    %141 = vmatpush1.msra.mxu0 0.0
    %142 = vmatprep.subr.mxu0 0.0
    %143 = vmatpush1.msra.mxu0 0.0
    %144 = vmatprep.subr.mxu0 0.0
    %145 = vmatpush1.msra.mxu0 0.0
    %146 = vmatprep.subr.mxu0 0.0
    %147 = vmatpush1.msra.mxu0 0.0
    %148 = vmatprep.mubr.f32.mxu0 0.0
    %149 = vmatmul.mubr.f32.gmra.mrb[0].mxu0 %v82
    %v150 = vpop.f32.mrb[0].mxu0
    %v151 = vadd.f32 0.0, %v150
    %v152 = vpop.f32.mrb[0].mxu0
    %v153 = vadd.f32 0.0, %v152
    %154 = vdwg.mxu0
    %v155 = vmul.f32 %v151, 0.0625
    %v156 = vmul.f32 %v153, 0.0625
    %157 = vst [vmem:[#allocation10] sm:$0xff] %v155
    %158 = vst [vmem:[#allocation10 + $0x8] sm:$0xff] %v156
    %v159 = vld [vmem:[#allocation10] sm:$0xff]
    %v160 = vld [vmem:[#allocation10 + $0x8] sm:$0xff]
    %v161 = vld [vmem:[#allocation8] sm:$0xff]
    %v162 = vld [vmem:[#allocation8 + $0x8] sm:$0xff]
    %v163 = vld [vmem:[#allocation8 + $0x10] sm:$0xff]
    %v164 = vld [vmem:[#allocation8 + $0x18] sm:$0xff]
    %s165 = scalar_lea.vmem [#allocation5], %s69
    %v166 = vld [vmem:[%s165] sm:$0xff]
    %vm167 = vcmask 130048
    %v169 = vsel %vm167, %v166, 0
    %171 = vmatprep.subr.mxu0 %v162
    %172 = vmatpush1.msra.mxu0 %v161
    %173 = vmatprep.subr.mxu0 %v164
    %174 = vmatpush1.msra.mxu0 %v163
    %175 = vmatprep.subr.mxu0 0.0
    %176 = vmatpush1.msra.mxu0 0.0
    %177 = vmatprep.subr.mxu0 0.0
    %178 = vmatpush1.msra.mxu0 0.0
    %179 = vmatprep.subr.mxu0 0.0
    %180 = vmatpush1.msra.mxu0 0.0
    %181 = vmatprep.subr.mxu0 0.0
    %182 = vmatpush1.msra.mxu0 0.0
    %183 = vmatprep.subr.mxu0 0.0
    %184 = vmatpush1.msra.mxu0 0.0
    %185 = vmatprep.subr.mxu0 0.0
    %186 = vmatpush1.msra.mxu0 0.0
    %187 = vmatprep.subr.mxu0 0.0
    %188 = vmatpush1.msra.mxu0 0.0
    %189 = vmatprep.subr.mxu0 0.0
    %190 = vmatpush1.msra.mxu0 0.0
    %191 = vmatprep.subr.mxu0 0.0
    %192 = vmatpush1.msra.mxu0 0.0
    %193 = vmatprep.subr.mxu0 0.0
    %194 = vmatpush1.msra.mxu0 0.0
    %195 = vmatprep.subr.mxu0 0.0
    %196 = vmatpush1.msra.mxu0 0.0
    %197 = vmatprep.subr.mxu0 0.0
    %198 = vmatpush1.msra.mxu0 0.0
    %199 = vmatprep.subr.mxu0 0.0
    %200 = vmatpush1.msra.mxu0 0.0
    %201 = vmatprep.subr.mxu0 0.0
    %202 = vmatpush1.msra.mxu0 0.0
    %203 = vmatprep.subr.mxu0 0.0
    %204 = vmatpush1.msra.mxu0 0.0
    %205 = vmatprep.subr.mxu0 0.0
    %206 = vmatpush1.msra.mxu0 0.0
    %207 = vmatprep.subr.mxu0 0.0
    %208 = vmatpush1.msra.mxu0 0.0
    %209 = vmatprep.subr.mxu0 0.0
    %210 = vmatpush1.msra.mxu0 0.0
    %211 = vmatprep.subr.mxu0 0.0
    %212 = vmatpush1.msra.mxu0 0.0
    %213 = vmatprep.subr.mxu0 0.0
    %214 = vmatpush1.msra.mxu0 0.0
    %215 = vmatprep.subr.mxu0 0.0
    %216 = vmatpush1.msra.mxu0 0.0
    %217 = vmatprep.subr.mxu0 0.0
    %218 = vmatpush1.msra.mxu0 0.0
    %219 = vmatprep.subr.mxu0 0.0
    %220 = vmatpush1.msra.mxu0 0.0
    %221 = vmatprep.subr.mxu0 0.0
    %222 = vmatpush1.msra.mxu0 0.0
    %223 = vmatprep.subr.mxu0 0.0
    %224 = vmatpush1.msra.mxu0 0.0
    %225 = vmatprep.subr.mxu0 0.0
    %226 = vmatpush1.msra.mxu0 0.0
    %227 = vmatprep.subr.mxu0 0.0
    %228 = vmatpush1.msra.mxu0 0.0
    %229 = vmatprep.subr.mxu0 0.0
    %230 = vmatpush1.msra.mxu0 0.0
    %231 = vmatprep.subr.mxu0 0.0
    %232 = vmatpush1.msra.mxu0 0.0
    %233 = vmatprep.subr.mxu0 0.0
    %234 = vmatpush1.msra.mxu0 0.0
    %235 = vmatprep.mubr.f32.mxu0 0.0
    %236 = vmatmul.mubr.f32.gmra.mrb[0].mxu0 %v169
    %v237 = vpop.f32.mrb[0].mxu0
    %v238 = vadd.f32 0.0, %v237
    %v239 = vpop.f32.mrb[0].mxu0
    %v240 = vadd.f32 0.0, %v239
    %241 = vdwg.mxu0
    %v242 = vmul.f32 %v159, %v238
    %v243 = vmul.f32 %v160, %v240
    %244 = vst [vmem:[#allocation10] sm:$0xff] %v242
    %245 = vst [vmem:[#allocation10 + $0x8] sm:$0xff] %v243
    // Predicated region
    $region34: #{tpu_custom_call.1} parent=1 // pred_check
      _
    $region35: #{tpu_custom_call.1} parent=1 // pred_check_branch
      %247 = sbr.rel (0) target = $region37
    $region36: #{tpu_custom_call.1} parent=1 // pred_region
      %s249 = ssub.s32 256, 256
      %250 = vsyncadd [#allocation4], %s249
      %s252 = sshll.u32 [#allocation10], 4
      %s253 = int_to_ptr.vmem [resolvable:$true] %s252
      %255 = dma.vmem_to_hbm [thread:$0]  %s253, 256, %s4, [#allocation4]
    $region37: #{tpu_custom_call.1} parent=1 // pred_fallthru
      _
    // Predicated region
    $region38: #{tpu_custom_call.1} parent=1 // pred_check
      _
    $region39: #{tpu_custom_call.1} parent=1 // pred_check_branch
      %257 = sbr.rel (0) target = $region41
    $region40: #{tpu_custom_call.1} parent=1 // pred_region
      %258 = dma.done [#allocation4], 256
    $region41: #{tpu_custom_call.1} parent=1 // pred_fallthru
      _
    %259 = vsyncpa [#allocation3], 1
    %260 = vsyncpa [#allocation6], 1
    %261 = vsyncpa [#allocation9], 1
    %262 = vsyncpa [#allocation4], 1

</llo_original>
